<compile_context>
chip_gen: v6e
topology: v6e:2x2x1
jax: 0.10.0
libtpu: 0.0.40
codegen_flags: <defaults>
</compile_context>

<pallas_src>
import functools

import jax
import jax.numpy as jnp
from jax.experimental import pallas as pl
from jax.experimental.pallas import tpu as pltpu


def _temporal_block_kernel(*refs, ksize, dilation, pad, off, tile_l,
                           multi_tile, has_down):
    """One (batch, L-tile) grid step.

    Inputs (channels on sublanes, time on lanes):
      x_ref  : (1, Cin,  TL)
      w1_ref : (K, Cout, Cin)    weight-normed conv1 taps
      b1_ref : (Cout, 1)
      w2_ref : (K, Cout, Cout)   weight-normed conv2 taps
      b2_ref : (Cout, 1)
      [wd_ref: (Cout, Cin), bd_ref: (Cout, 1)]   only if Cin != Cout
    Output:
      o_ref  : (1, Cout, TL)
    Scratch (persists across grid steps -> causal halo carry):
      xbuf   : (Cin,  off + TL)   halo in [off-pad, off), current tile at [off:)
      h1buf  : (Cout, off + TL)
    """
    if has_down:
        (x_ref, w1_ref, b1_ref, w2_ref, b2_ref, wd_ref, bd_ref,
         o_ref, xbuf, h1buf) = refs
    else:
        (x_ref, w1_ref, b1_ref, w2_ref, b2_ref, o_ref, xbuf, h1buf) = refs
        wd_ref = bd_ref = None

    K, d, TL = ksize, dilation, tile_l
    cin = xbuf.shape[0]
    cout = h1buf.shape[0]
    lt = pl.program_id(1)

    # Start of a new sequence: reset the causal halo to zeros (in-kernel
    # causal padding - no wrapper jnp.pad pass).
    if pad > 0:
        @pl.when(lt == 0)
        def _():
            xbuf[:, off - pad:off] = jnp.zeros((cin, pad), jnp.float32)
            h1buf[:, off - pad:off] = jnp.zeros((cout, pad), jnp.float32)

    # Stage this tile of x; `off` is a multiple of 128 -> lane-aligned store.
    xt = x_ref[0].astype(jnp.float32)                       # (Cin, TL)
    xbuf[:, off:] = xt

    # ---- conv1: K dilated taps, each an MXU matmul, f32 accumulation -------
    acc1 = jnp.zeros((cout, TL), jnp.float32)
    for k in range(K):                                       # static -> unrolled
        s = off - pad + k * d
        acc1 += jnp.dot(w1_ref[k], xbuf[:, s:s + TL],
                        preferred_element_type=jnp.float32)
    h1 = jnp.maximum(acc1 + b1_ref[...], 0.0)                # (Cout, TL)

    # ---- conv2 over h1 (halo of previous tile's h1 already in h1buf) -------
    h1buf[:, off:] = h1
    acc2 = jnp.zeros((cout, TL), jnp.float32)
    for k in range(K):
        s = off - pad + k * d
        acc2 += jnp.dot(w2_ref[k], h1buf[:, s:s + TL],
                        preferred_element_type=jnp.float32)
    h2 = jnp.maximum(acc2 + b2_ref[...], 0.0)                # (Cout, TL)

    # ---- residual path ------------------------------------------------------
    if has_down:
        res = jnp.dot(wd_ref[...], xt,
                      preferred_element_type=jnp.float32) + bd_ref[...]
    else:
        res = xt                                             # identity residual

    o_ref[0] = jnp.maximum(res + h2, 0.0).astype(o_ref.dtype)

    # ---- carry the last `pad` time steps into the halo for the next tile ----
    if multi_tile and pad > 0:
        @pl.when(lt + 1 < pl.num_programs(1))
        def _():
            xbuf[:, off - pad:off] = xbuf[:, off + TL - pad:off + TL]
            h1buf[:, off - pad:off] = h1buf[:, off + TL - pad:off + TL]


def temporal_block(x_ncl, params, *, ksize, dilation, tile_l=512):
    """x_ncl: (B, Cin, L) float32, PyTorch NCL layout.  Returns (B, Cout, L)."""
    w1, b1, w2, b2, wd, bd = params          # wd/bd are None when Cin == Cout
    B, Cin, L = x_ncl.shape
    K = ksize
    Cout = w1.shape[1]
    pad = (K - 1) * dilation
    has_down = wd is not None
    assert has_down or Cin == Cout, "identity residual requires Cin == Cout"

    # ---- pick the L tile: multiple of 128 (lane-dense), >= pad for the carry.
    tl_target = max(128, (int(tile_l) // 128) * 128)
    if L <= tl_target:
        tl = L                                # single tile: any L is legal
    else:
        tl = max(tl_target, -(-pad // 128) * 128)
    Lp = -(-L // tl) * tl
    n_lt = Lp // tl
    x_in = x_ncl if Lp == L else jnp.pad(x_ncl, ((0, 0), (0, 0), (0, Lp - L)))

    # lane-aligned start of the "current tile" region inside the scratch
    off = -(-pad // 128) * 128 if pad > 0 else 0

    b1c = b1.reshape(Cout, 1)
    b2c = b2.reshape(Cout, 1)

    in_specs = [
        pl.BlockSpec((1, Cin, tl), lambda b, t: (b, 0, t)),
        pl.BlockSpec((K, Cout, Cin), lambda b, t: (0, 0, 0)),
        pl.BlockSpec((Cout, 1), lambda b, t: (0, 0)),
        pl.BlockSpec((K, Cout, Cout), lambda b, t: (0, 0, 0)),
        pl.BlockSpec((Cout, 1), lambda b, t: (0, 0)),
    ]
    args = [x_in, w1, b1c, w2, b2c]
    if has_down:
        in_specs += [pl.BlockSpec((Cout, Cin), lambda b, t: (0, 0)),
                     pl.BlockSpec((Cout, 1), lambda b, t: (0, 0))]
        args += [wd, bd.reshape(Cout, 1)]

    # ---- VMEM budget (double-buffered blocks + persistent scratch) ----------
    w_bytes = 4 * (K * Cout * Cin + K * Cout * Cout + 2 * Cout
                   + (Cout * Cin + Cout if has_down else 0))
    act_bytes = 4 * (Cin * tl + Cout * tl)
    scratch_bytes = 4 * (Cin + Cout) * (off + tl)
    vmem_est = 2 * (w_bytes + act_bytes) + scratch_bytes
    vmem_limit = int(min(max(4 * vmem_est, 16 * 2**20), 48 * 2**20))

    flops = 2 * B * Lp * (K * Cin * Cout + K * Cout * Cout
                          + (Cin * Cout if has_down else 0))
    cost = pl.CostEstimate(flops=flops, transcendentals=0,
                           bytes_accessed=4 * B * Lp * (Cin + Cout) + w_bytes)

    kern = functools.partial(
        _temporal_block_kernel, ksize=K, dilation=dilation, pad=pad, off=off,
        tile_l=tl, multi_tile=(n_lt > 1), has_down=has_down)

    out = pl.pallas_call(
        kern,
        out_shape=jax.ShapeDtypeStruct((B, Cout, Lp), jnp.float32),
        grid_spec=pltpu.PrefetchScalarGridSpec(
            num_scalar_prefetch=0,
            grid=(B, n_lt),
            in_specs=in_specs,
            out_specs=pl.BlockSpec((1, Cout, tl), lambda b, t: (b, 0, t)),
            scratch_shapes=[pltpu.VMEM((Cin, off + tl), jnp.float32),
                            pltpu.VMEM((Cout, off + tl), jnp.float32)]),
        compiler_params=pltpu.CompilerParams(
            dimension_semantics=("parallel", "arbitrary"),
            vmem_limit_bytes=vmem_limit),
        cost_estimate=cost,
    )(*args)

    return out[..., :L] if Lp != L else out


def make_params(key, cin, cout, ksize, with_downsample=True):
    """Parameters in kernel layout: w = (K, Cout, Cin[/Cout]), b = (Cout,).

    weight_norm (PyTorch default dim=0): w = g * v / ||v||, norm taken over
    (Cin, K) per output channel.  A non-trivial g is used.
    """
    ks = jax.random.split(key, 8)
    v1 = jax.random.normal(ks[0], (cout, cin, ksize), jnp.float32) * 0.01
    v2 = jax.random.normal(ks[1], (cout, cout, ksize), jnp.float32) * 0.01
    g1 = 1.0 + 0.1 * jax.random.normal(ks[2], (cout, 1, 1), jnp.float32)
    g2 = 1.0 + 0.1 * jax.random.normal(ks[3], (cout, 1, 1), jnp.float32)
    n1 = jnp.sqrt(jnp.sum(v1 ** 2, axis=(1, 2), keepdims=True))
    n2 = jnp.sqrt(jnp.sum(v2 ** 2, axis=(1, 2), keepdims=True))
    w1 = jnp.transpose(g1 * v1 / n1, (2, 0, 1))              # (K, Cout, Cin)
    w2 = jnp.transpose(g2 * v2 / n2, (2, 0, 1))              # (K, Cout, Cout)
    b1 = jax.random.normal(ks[4], (cout,), jnp.float32) * 0.05
    b2 = jax.random.normal(ks[5], (cout,), jnp.float32) * 0.05
    if with_downsample:
        wd = jax.random.normal(ks[6], (cout, cin), jnp.float32) * 0.01
        bd = jax.random.normal(ks[7], (cout,), jnp.float32) * 0.05
    else:
        wd = bd = None
    return (w1, b1, w2, b2, wd, bd)


_PREC = jax.lax.Precision.HIGHEST


def _reference(x, params, *, ksize, dilation):
    """Pure-JAX reference in NCL layout for verification."""
    w1, b1, w2, b2, wd, bd = params
    pad = (ksize - 1) * dilation
    L = x.shape[-1]

    def cconv(inp, w, b):
        xp = jnp.pad(inp, ((0, 0), (0, 0), (pad, 0)))
        out = b[None, :, None]
        for k in range(ksize):
            out = out + jnp.einsum('oc,bcl->bol', w[k],
                                   xp[:, :, k * dilation:k * dilation + L],
                                   precision=_PREC)
        return out

    h1 = jax.nn.relu(cconv(x, w1, b1))
    h2 = jax.nn.relu(cconv(h1, w2, b2))
    if wd is not None:
        res = jnp.einsum('oc,bcl->bol', wd, x, precision=_PREC) + bd[None, :, None]
    else:
        res = x
    return jax.nn.relu(res + h2)


if __name__ == "__main__":
    key = jax.random.PRNGKey(0)
    k1, k2, k3, k4 = jax.random.split(key, 4)

    # Case 1: Cin != Cout (1x1 downsample residual), 2 L-tiles -> halo carry.
    B, Cin, Cout, L, K, DIL = 2, 8, 16, 256, 3, 4            # pad = 8
    x = jax.random.normal(k1, (B, Cin, L), jnp.float32)
    params = make_params(k2, Cin, Cout, K, with_downsample=True)
    out = jax.block_until_ready(
        temporal_block(x, params, ksize=K, dilation=DIL, tile_l=128))
    ref = _reference(x, params, ksize=K, dilation=DIL)
    assert out.shape == (B, Cout, L)
    assert jnp.allclose(out, ref, atol=1e-3, rtol=1e-3), "case 1 mismatch"

    # Case 2: Cin == Cout (identity residual), L not a multiple of the tile.
    B2, C2, L2, K2, DIL2 = 2, 16, 200, 2, 2                  # pad = 2
    x2 = jax.random.normal(k3, (B2, C2, L2), jnp.float32)
    params2 = make_params(k4, C2, C2, K2, with_downsample=False)
    out2 = jax.block_until_ready(
        temporal_block(x2, params2, ksize=K2, dilation=DIL2, tile_l=128))
    ref2 = _reference(x2, params2, ksize=K2, dilation=DIL2)
    assert out2.shape == (B2, C2, L2)
    assert jnp.allclose(out2, ref2, atol=1e-3, rtol=1e-3), "case 2 mismatch"

    print("KERNEL_OK")
</pallas_src>

<mosaic_0001>
module attributes {stable_mosaic.version = 11 : i64} {
  func.func @_temporal_block_kernel(%arg0: i32, %arg1: i32, %arg2: memref<1x8x128xf32, #tpu.memory_space<vmem>>, %arg3: memref<3x16x8xf32, #tpu.memory_space<vmem>>, %arg4: memref<16x1xf32, #tpu.memory_space<vmem>>, %arg5: memref<3x16x16xf32, #tpu.memory_space<vmem>>, %arg6: memref<16x1xf32, #tpu.memory_space<vmem>>, %arg7: memref<16x8xf32, #tpu.memory_space<vmem>>, %arg8: memref<16x1xf32, #tpu.memory_space<vmem>>, %arg9: memref<1x16x128xf32, #tpu.memory_space<vmem>>, %arg10: memref<8x256xf32, #tpu.memory_space<vmem>>, %arg11: memref<16x256xf32, #tpu.memory_space<vmem>>) attributes {dimension_semantics = [#tpu.dimension_semantics<parallel>, #tpu.dimension_semantics<arbitrary>], iteration_bounds = array<i64: 2, 2>, scalar_prefetch = 0 : i64, scratch_operands = 2 : i64, tpu.core_type = #tpu.core_type<tc>, window_params = [{transform_indices = @transform_0, window_bounds = array<i64: 1, 8, 128>}, {pipeline_mode = #tpu.pipeline_mode<synchronous>, transform_indices = @transform_1, window_bounds = array<i64: 3, 16, 8>}, {pipeline_mode = #tpu.pipeline_mode<synchronous>, transform_indices = @transform_2, window_bounds = array<i64: 16, 1>}, {pipeline_mode = #tpu.pipeline_mode<synchronous>, transform_indices = @transform_3, window_bounds = array<i64: 3, 16, 16>}, {pipeline_mode = #tpu.pipeline_mode<synchronous>, transform_indices = @transform_4, window_bounds = array<i64: 16, 1>}, {pipeline_mode = #tpu.pipeline_mode<synchronous>, transform_indices = @transform_5, window_bounds = array<i64: 16, 8>}, {pipeline_mode = #tpu.pipeline_mode<synchronous>, transform_indices = @transform_6, window_bounds = array<i64: 16, 1>}, {transform_indices = @transform_7, window_bounds = array<i64: 1, 16, 128>}]} {
    %c0_i32 = arith.constant 0 : i32
    %0 = arith.cmpi eq, %arg1, %c0_i32 : i32
    %1 = arith.extui %0 : i1 to i32
    %c0_i32_0 = arith.constant 0 : i32
    %2 = arith.cmpi ne, %1, %c0_i32_0 : i32
    scf.if %2 {
      %cst_55 = arith.constant 0.000000e+00 : f32
      %64 = vector.broadcast %cst_55 : f32 to vector<8x8xf32>
      %c0_56 = arith.constant 0 : index
      %c120_57 = arith.constant 120 : index
      %65 = vector.load %arg10[%c0_56, %c120_57] : memref<8x256xf32, #tpu.memory_space<vmem>>, vector<8x8xf32>
      tpu.vector_store %arg10[%c0_56, %c120_57], %64 {strides = array<i32>} : memref<8x256xf32, #tpu.memory_space<vmem>>, vector<8x8xf32>,
      %cst_58 = arith.constant 0.000000e+00 : f32
      %66 = vector.broadcast %cst_58 : f32 to vector<16x8xf32>
      %c0_59 = arith.constant 0 : index
      %c120_60 = arith.constant 120 : index
      %67 = vector.load %arg11[%c0_59, %c120_60] : memref<16x256xf32, #tpu.memory_space<vmem>>, vector<16x8xf32>
      tpu.vector_store %arg11[%c0_59, %c120_60], %66 {strides = array<i32>} : memref<16x256xf32, #tpu.memory_space<vmem>>, vector<16x8xf32>,
    } else {
    }
    %c0 = arith.constant 0 : index
    %c0_1 = arith.constant 0 : index
    %c0_2 = arith.constant 0 : index
    %3 = vector.load %arg2[%c0, %c0_1, %c0_2] : memref<1x8x128xf32, #tpu.memory_space<vmem>>, vector<1x8x128xf32>
    %4 = vector.shape_cast %3 : vector<1x8x128xf32> to vector<8x128xf32>
    %c0_3 = arith.constant 0 : index
    %c128 = arith.constant 128 : index
    %5 = vector.load %arg10[%c0_3, %c128] : memref<8x256xf32, #tpu.memory_space<vmem>>, vector<8x128xf32>
    tpu.vector_store %arg10[%c0_3, %c128], %4 {strides = array<i32>} : memref<8x256xf32, #tpu.memory_space<vmem>>, vector<8x128xf32>,
    %cst = arith.constant 0.000000e+00 : f32
    %6 = vector.broadcast %cst : f32 to vector<16x128xf32>
    %c0_4 = arith.constant 0 : index
    %c0_5 = arith.constant 0 : index
    %c0_6 = arith.constant 0 : index
    %7 = vector.load %arg3[%c0_4, %c0_5, %c0_6] : memref<3x16x8xf32, #tpu.memory_space<vmem>>, vector<1x16x8xf32>
    %8 = vector.shape_cast %7 : vector<1x16x8xf32> to vector<16x8xf32>
    %c0_7 = arith.constant 0 : index
    %c120 = arith.constant 120 : index
    %9 = vector.load %arg10[%c0_7, %c120] : memref<8x256xf32, #tpu.memory_space<vmem>>, vector<8x128xf32>
    %cst_8 = arith.constant dense<0.000000e+00> : vector<16x128xf32>
    %10 = tpu.matmul %8, %9, %cst_8 {dimension_numbers = #tpu.dot_dimension_numbers<[1], [0], [0], [1], [0, 0, 1, 1], [], []>} : vector<16x8xf32>, vector<8x128xf32>, vector<16x128xf32> -> vector<16x128xf32>
    %11 = arith.addf %6, %10 : vector<16x128xf32>
    %c1 = arith.constant 1 : index
    %c0_9 = arith.constant 0 : index
    %c0_10 = arith.constant 0 : index
    %12 = vector.load %arg3[%c1, %c0_9, %c0_10] : memref<3x16x8xf32, #tpu.memory_space<vmem>>, vector<1x16x8xf32>
    %13 = vector.shape_cast %12 : vector<1x16x8xf32> to vector<16x8xf32>
    %c0_11 = arith.constant 0 : index
    %c124 = arith.constant 124 : index
    %14 = vector.load %arg10[%c0_11, %c124] : memref<8x256xf32, #tpu.memory_space<vmem>>, vector<8x128xf32>
    %cst_12 = arith.constant dense<0.000000e+00> : vector<16x128xf32>
    %15 = tpu.matmul %13, %14, %cst_12 {dimension_numbers = #tpu.dot_dimension_numbers<[1], [0], [0], [1], [0, 0, 1, 1], [], []>} : vector<16x8xf32>, vector<8x128xf32>, vector<16x128xf32> -> vector<16x128xf32>
    %16 = arith.addf %11, %15 : vector<16x128xf32>
    %c2 = arith.constant 2 : index
    %c0_13 = arith.constant 0 : index
    %c0_14 = arith.constant 0 : index
    %17 = vector.load %arg3[%c2, %c0_13, %c0_14] : memref<3x16x8xf32, #tpu.memory_space<vmem>>, vector<1x16x8xf32>
    %18 = vector.shape_cast %17 : vector<1x16x8xf32> to vector<16x8xf32>
    %c0_15 = arith.constant 0 : index
    %c128_16 = arith.constant 128 : index
    %19 = vector.load %arg10[%c0_15, %c128_16] : memref<8x256xf32, #tpu.memory_space<vmem>>, vector<8x128xf32>
    %cst_17 = arith.constant dense<0.000000e+00> : vector<16x128xf32>
    %20 = tpu.matmul %18, %19, %cst_17 {dimension_numbers = #tpu.dot_dimension_numbers<[1], [0], [0], [1], [0, 0, 1, 1], [], []>} : vector<16x8xf32>, vector<8x128xf32>, vector<16x128xf32> -> vector<16x128xf32>
    %21 = arith.addf %16, %20 : vector<16x128xf32>
    %c0_18 = arith.constant 0 : index
    %c0_19 = arith.constant 0 : index
    %22 = vector.load %arg4[%c0_18, %c0_19] : memref<16x1xf32, #tpu.memory_space<vmem>>, vector<16x1xf32>
    %23 = vector.broadcast %22 : vector<16x1xf32> to vector<16x128xf32>
    %24 = arith.addf %21, %23 : vector<16x128xf32>
    %cst_20 = arith.constant 0.000000e+00 : f32
    %25 = vector.broadcast %cst_20 : f32 to vector<16x128xf32>
    %26 = arith.maximumf %24, %25 : vector<16x128xf32>
    %c0_21 = arith.constant 0 : index
    %c128_22 = arith.constant 128 : index
    %27 = vector.load %arg11[%c0_21, %c128_22] : memref<16x256xf32, #tpu.memory_space<vmem>>, vector<16x128xf32>
    tpu.vector_store %arg11[%c0_21, %c128_22], %26 {strides = array<i32>} : memref<16x256xf32, #tpu.memory_space<vmem>>, vector<16x128xf32>,
    %cst_23 = arith.constant 0.000000e+00 : f32
    %28 = vector.broadcast %cst_23 : f32 to vector<16x128xf32>
    %c0_24 = arith.constant 0 : index
    %c0_25 = arith.constant 0 : index
    %c0_26 = arith.constant 0 : index
    %29 = vector.load %arg5[%c0_24, %c0_25, %c0_26] : memref<3x16x16xf32, #tpu.memory_space<vmem>>, vector<1x16x16xf32>
    %30 = vector.shape_cast %29 : vector<1x16x16xf32> to vector<16x16xf32>
    %c0_27 = arith.constant 0 : index
    %c120_28 = arith.constant 120 : index
    %31 = vector.load %arg11[%c0_27, %c120_28] : memref<16x256xf32, #tpu.memory_space<vmem>>, vector<16x128xf32>
    %cst_29 = arith.constant dense<0.000000e+00> : vector<16x128xf32>
    %32 = tpu.matmul %30, %31, %cst_29 {dimension_numbers = #tpu.dot_dimension_numbers<[1], [0], [0], [1], [0, 0, 1, 1], [], []>} : vector<16x16xf32>, vector<16x128xf32>, vector<16x128xf32> -> vector<16x128xf32>
    %33 = arith.addf %28, %32 : vector<16x128xf32>
    %c1_30 = arith.constant 1 : index
    %c0_31 = arith.constant 0 : index
    %c0_32 = arith.constant 0 : index
    %34 = vector.load %arg5[%c1_30, %c0_31, %c0_32] : memref<3x16x16xf32, #tpu.memory_space<vmem>>, vector<1x16x16xf32>
    %35 = vector.shape_cast %34 : vector<1x16x16xf32> to vector<16x16xf32>
    %c0_33 = arith.constant 0 : index
    %c124_34 = arith.constant 124 : index
    %36 = vector.load %arg11[%c0_33, %c124_34] : memref<16x256xf32, #tpu.memory_space<vmem>>, vector<16x128xf32>
    %cst_35 = arith.constant dense<0.000000e+00> : vector<16x128xf32>
    %37 = tpu.matmul %35, %36, %cst_35 {dimension_numbers = #tpu.dot_dimension_numbers<[1], [0], [0], [1], [0, 0, 1, 1], [], []>} : vector<16x16xf32>, vector<16x128xf32>, vector<16x128xf32> -> vector<16x128xf32>
    %38 = arith.addf %33, %37 : vector<16x128xf32>
    %c2_36 = arith.constant 2 : index
    %c0_37 = arith.constant 0 : index
    %c0_38 = arith.constant 0 : index
    %39 = vector.load %arg5[%c2_36, %c0_37, %c0_38] : memref<3x16x16xf32, #tpu.memory_space<vmem>>, vector<1x16x16xf32>
    %40 = vector.shape_cast %39 : vector<1x16x16xf32> to vector<16x16xf32>
    %c0_39 = arith.constant 0 : index
    %c128_40 = arith.constant 128 : index
    %41 = vector.load %arg11[%c0_39, %c128_40] : memref<16x256xf32, #tpu.memory_space<vmem>>, vector<16x128xf32>
    %cst_41 = arith.constant dense<0.000000e+00> : vector<16x128xf32>
    %42 = tpu.matmul %40, %41, %cst_41 {dimension_numbers = #tpu.dot_dimension_numbers<[1], [0], [0], [1], [0, 0, 1, 1], [], []>} : vector<16x16xf32>, vector<16x128xf32>, vector<16x128xf32> -> vector<16x128xf32>
    %43 = arith.addf %38, %42 : vector<16x128xf32>
    %c0_42 = arith.constant 0 : index
    %c0_43 = arith.constant 0 : index
    %44 = vector.load %arg6[%c0_42, %c0_43] : memref<16x1xf32, #tpu.memory_space<vmem>>, vector<16x1xf32>
    %45 = vector.broadcast %44 : vector<16x1xf32> to vector<16x128xf32>
    %46 = arith.addf %43, %45 : vector<16x128xf32>
    %cst_44 = arith.constant 0.000000e+00 : f32
    %47 = vector.broadcast %cst_44 : f32 to vector<16x128xf32>
    %48 = arith.maximumf %46, %47 : vector<16x128xf32>
    %c0_45 = arith.constant 0 : index
    %c0_46 = arith.constant 0 : index
    %49 = vector.load %arg7[%c0_45, %c0_46] : memref<16x8xf32, #tpu.memory_space<vmem>>, vector<16x8xf32>
    %cst_47 = arith.constant dense<0.000000e+00> : vector<16x128xf32>
    %50 = tpu.matmul %49, %4, %cst_47 {dimension_numbers = #tpu.dot_dimension_numbers<[1], [0], [0], [1], [0, 0, 1, 1], [], []>} : vector<16x8xf32>, vector<8x128xf32>, vector<16x128xf32> -> vector<16x128xf32>
    %c0_48 = arith.constant 0 : index
    %c0_49 = arith.constant 0 : index
    %51 = vector.load %arg8[%c0_48, %c0_49] : memref<16x1xf32, #tpu.memory_space<vmem>>, vector<16x1xf32>
    %52 = vector.broadcast %51 : vector<16x1xf32> to vector<16x128xf32>
    %53 = arith.addf %50, %52 : vector<16x128xf32>
    %54 = arith.addf %53, %48 : vector<16x128xf32>
    %cst_50 = arith.constant 0.000000e+00 : f32
    %55 = vector.broadcast %cst_50 : f32 to vector<16x128xf32>
    %56 = arith.maximumf %54, %55 : vector<16x128xf32>
    %c0_51 = arith.constant 0 : index
    %c0_52 = arith.constant 0 : index
    %c0_53 = arith.constant 0 : index
    %57 = vector.load %arg9[%c0_51, %c0_52, %c0_53] : memref<1x16x128xf32, #tpu.memory_space<vmem>>, vector<1x16x128xf32>
    %58 = vector.shape_cast %57 : vector<1x16x128xf32> to vector<16x128xf32>
    %59 = vector.shape_cast %56 : vector<16x128xf32> to vector<1x16x128xf32>
    tpu.vector_store %arg9[%c0_51, %c0_52, %c0_53], %59 {strides = array<i32>} : memref<1x16x128xf32, #tpu.memory_space<vmem>>, vector<1x16x128xf32>,
    %c1_i32 = arith.constant 1 : i32
    %60 = arith.addi %arg1, %c1_i32 : i32
    %c2_i32 = arith.constant 2 : i32
    %61 = arith.cmpi slt, %60, %c2_i32 : i32
    %62 = arith.extui %61 : i1 to i32
    %c0_i32_54 = arith.constant 0 : i32
    %63 = arith.cmpi ne, %62, %c0_i32_54 : i32
    scf.if %63 {
      %c0_55 = arith.constant 0 : index
      %c248 = arith.constant 248 : index
      %64 = vector.load %arg10[%c0_55, %c248] : memref<8x256xf32, #tpu.memory_space<vmem>>, vector<8x8xf32>
      %c0_56 = arith.constant 0 : index
      %c120_57 = arith.constant 120 : index
      %65 = vector.load %arg10[%c0_56, %c120_57] : memref<8x256xf32, #tpu.memory_space<vmem>>, vector<8x8xf32>
      tpu.vector_store %arg10[%c0_56, %c120_57], %64 {strides = array<i32>} : memref<8x256xf32, #tpu.memory_space<vmem>>, vector<8x8xf32>,
      %c0_58 = arith.constant 0 : index
      %c248_59 = arith.constant 248 : index
      %66 = vector.load %arg11[%c0_58, %c248_59] : memref<16x256xf32, #tpu.memory_space<vmem>>, vector<16x8xf32>
      %c0_60 = arith.constant 0 : index
      %c120_61 = arith.constant 120 : index
      %67 = vector.load %arg11[%c0_60, %c120_61] : memref<16x256xf32, #tpu.memory_space<vmem>>, vector<16x8xf32>
      tpu.vector_store %arg11[%c0_60, %c120_61], %66 {strides = array<i32>} : memref<16x256xf32, #tpu.memory_space<vmem>>, vector<16x8xf32>,
    } else {
    }
    return
  }
  func.func @transform_0(%arg0: i32, %arg1: i32) -> (i32, i32, i32) {
    %c0_i32 = arith.constant 0 : i32
    %c0_i32_0 = arith.constant 0 : i32
    return %arg0, %c0_i32, %arg1 : i32, i32, i32
  }
  func.func @transform_1(%arg0: i32, %arg1: i32) -> (i32, i32, i32) {
    %c0_i32 = arith.constant 0 : i32
    %c0_i32_0 = arith.constant 0 : i32
    %c0_i32_1 = arith.constant 0 : i32
    %c0_i32_2 = arith.constant 0 : i32
    return %c0_i32, %c0_i32_0, %c0_i32_1 : i32, i32, i32
  }
  func.func @transform_2(%arg0: i32, %arg1: i32) -> (i32, i32) {
    %c0_i32 = arith.constant 0 : i32
    %c0_i32_0 = arith.constant 0 : i32
    %c0_i32_1 = arith.constant 0 : i32
    return %c0_i32, %c0_i32_0 : i32, i32
  }
  func.func @transform_3(%arg0: i32, %arg1: i32) -> (i32, i32, i32) {
    %c0_i32 = arith.constant 0 : i32
    %c0_i32_0 = arith.constant 0 : i32
    %c0_i32_1 = arith.constant 0 : i32
    %c0_i32_2 = arith.constant 0 : i32
    return %c0_i32, %c0_i32_0, %c0_i32_1 : i32, i32, i32
  }
  func.func @transform_4(%arg0: i32, %arg1: i32) -> (i32, i32) {
    %c0_i32 = arith.constant 0 : i32
    %c0_i32_0 = arith.constant 0 : i32
    %c0_i32_1 = arith.constant 0 : i32
    return %c0_i32, %c0_i32_0 : i32, i32
  }
  func.func @transform_5(%arg0: i32, %arg1: i32) -> (i32, i32) {
    %c0_i32 = arith.constant 0 : i32
    %c0_i32_0 = arith.constant 0 : i32
    %c0_i32_1 = arith.constant 0 : i32
    return %c0_i32, %c0_i32_0 : i32, i32
  }
  func.func @transform_6(%arg0: i32, %arg1: i32) -> (i32, i32) {
    %c0_i32 = arith.constant 0 : i32
    %c0_i32_0 = arith.constant 0 : i32
    %c0_i32_1 = arith.constant 0 : i32
    return %c0_i32, %c0_i32_0 : i32, i32
  }
  func.func @transform_7(%arg0: i32, %arg1: i32) -> (i32, i32, i32) {
    %c0_i32 = arith.constant 0 : i32
    %c0_i32_0 = arith.constant 0 : i32
    return %arg0, %c0_i32, %arg1 : i32, i32, i32
  }
}

</mosaic_0001>

<llo_original>
// kernel: tpu_custom_call.1
$region0: #{tpu_custom_call.1}
  #allocation0 [shape = 'u32[]', space=smem, size = 0x4, offset = 0x4, fixed_abs, tag = 'smem constant byte address 0x4 - core index']
  #allocation1 [shape = 'u32[144,128]{1,0:T(1,128)}', space=vmem, size = 0x12000, scoped, tag = 'internal scratch']
  #allocation2 [shape = 'f32[8,256]{1,0:T(8,128)}', space=vmem, size = 0x2000, scoped, tag = 'scratch operand']
  #allocation3 [shape = 'f32[16,256]{1,0:T(8,128)}', space=vmem, size = 0x4000, scoped, tag = 'scratch operand']
  %s0 = inlined_call_operand.vmem [shape: f32[2,8,256], index: 0, kind: input, shape index: {}]
  %s1 = inlined_call_operand.vmem [shape: f32[3,16,8], index: 1, kind: input, shape index: {}]
  %s2 = inlined_call_operand.vmem [shape: f32[16,1], index: 2, kind: input, shape index: {}]
  %s3 = inlined_call_operand.vmem [shape: f32[3,16,16], index: 3, kind: input, shape index: {}]
  %s4 = inlined_call_operand.vmem [shape: f32[16,1], index: 4, kind: input, shape index: {}]
  %s5 = inlined_call_operand.vmem [shape: f32[16,8], index: 5, kind: input, shape index: {}]
  %s6 = inlined_call_operand.vmem [shape: f32[16,1], index: 6, kind: input, shape index: {}]
  %s7 = inlined_call_operand.hbm [shape: f32[2,16,256], index: 7, kind: output, shape index: {}]
  %s8 = sld [smem:[#allocation0]]
  $region69: #{tpu_custom_call.1} parent=0
    _
  %s10 = ssub.s32 1, %s8
  %s11 = scalar_select 0, %s10, %s8
  $region1: #{tpu_custom_call.1} parent=0
    #allocation4 [shape = 'u8[16384]{0}', space=vmem, size = 0x4000, scoped, tag = 'output window, operand 0']
    #allocation5 [shape = 's32[2]{0}', space=sflag, size = 0x8, scoped, tag = 'scoped memory for tpu_custom_call.1']
    %12 = vsyncpa [#allocation5], 0
    %s13 = scalar_lea.sflag [#allocation5], 1
    %14 = vsyncpa %s13, 0
    loop: start=0, step=1, limit=6
    $region2: #{tpu_custom_call.1} parent=1 // loop_pre_header
      _
    $region3: #{tpu_custom_call.1} parent=1 // loop_header
      %s16 = sphi 0, %s20
      %p17 = scmp.ge.s32.totalorder %s16, 6
      %s23 = sphi 0, %s35
      %s24 = sphi 0, %s31
      %s25 = sphi 0, %s23
      %s26 = sphi 0, %s24
      %s27 = sphi 0, %s25
      %s28 = sphi 0, %s26
      %s40 = sphi 0, %s42
      %s43 = sphi 0, %s40
      %s44 = sphi 0, %s43
      %s60 = sphi 0, %s44
      %s64 = sphi 0, %s64
      %s66 = sphi 0, %s64
      %s67 = sphi 0, %s66
      %s81 = sphi 0, %s67
      %s85 = sphi 0, %s85
      %s87 = sphi 0, %s85
      %s88 = sphi 0, %s87
      %s102 = sphi 0, %s88
      %s106 = sphi 0, %s106
      %s108 = sphi 0, %s106
      %s109 = sphi 0, %s108
      %s123 = sphi 0, %s109
      %s127 = sphi 0, %s127
      %s129 = sphi 0, %s127
      %s130 = sphi 0, %s129
      %s144 = sphi 0, %s130
      %s148 = sphi 0, %s148
      %s150 = sphi 0, %s148
      %s151 = sphi 0, %s150
      %s165 = sphi 0, %s151
      %s169 = sphi 0, %s169
      %s171 = sphi 0, %s169
      %s172 = sphi 0, %s171
      %s186 = sphi 0, %s172
      %s194 = sphi 0, %s196
      %s197 = sphi 0, %s194
      %s198 = sphi 0, %s197
      %s214 = sphi 0, %s198
    $region4: #{tpu_custom_call.1} parent=1 // loop_header_branch
      %19 = sbr.rel (%p17) target = $region8
    $region5: #{tpu_custom_call.1} parent=1 // loop_body
      %s21 = ssub.s32 %s16, 1
      %s22 = ssub.s32 %s16, 2
      %s29 = sadd.s32 1, %s24
      %p30 = scmp.ge.s32.totalorder %s29, 2
      %s31 = scalar_select %p30, 0, %s29
      %s32 = sadd.s32 1, %s23
      %s33 = scalar_select %p30, %s32, %s23
      %p34 = scmp.ge.s32.totalorder %s33, 2
      %s35 = scalar_select %p34, 0, %s33
      %s36 = ssub.s32 %s23, %s35
      %s37 = ssub.s32 %s24, %s31
      %s38 = sor.u32 %s36, %s37
      %p39 = scmp.eq.s32.totalorder %s38, 0
      %s41 = sadd.s32 %s40, 1
      %s42 = scalar_select %p39, %s40, %s41
      %p45 = pneg %p39
      %p46 = scmp.eq.s32.totalorder %s16, 3
      %p47 = por %p45, %p46
      %p48 = scmp.ne.s32.totalorder %s40, %s43
      %p49 = scmp.eq.s32.totalorder %s16, 0
      %p50 = por %p48, %p49
      %p51 = scmp.ne.s32.totalorder %s40, %s43
      %p52 = scmp.eq.s32.totalorder %s21, 3
      %p53 = por %p51, %p52
      %p54 = scmp.ne.s32.totalorder %s43, %s44
      %p55 = scmp.eq.s32.totalorder %s21, 0
      %p56 = por %p54, %p55
      %p57 = scmp.ne.s32.totalorder %s43, %s44
      %p58 = scmp.eq.s32.totalorder %s22, 3
      %p59 = por %p57, %p58
      %p61 = scmp.ne.s32.totalorder %s44, %s60
      %p62 = scmp.eq.s32.totalorder %s22, 0
      %p63 = por %p61, %p62
      %s65 = sadd.s32 %s64, 1
      %p68 = scmp.eq.s32.totalorder %s16, 3
      %p69 = scmp.ne.s32.totalorder %s64, %s66
      %p70 = scmp.eq.s32.totalorder %s16, 0
      %p71 = por %p69, %p70
      %p72 = scmp.ne.s32.totalorder %s64, %s66
      %p73 = scmp.eq.s32.totalorder %s21, 3
      %p74 = por %p72, %p73
      %p75 = scmp.ne.s32.totalorder %s66, %s67
      %p76 = scmp.eq.s32.totalorder %s21, 0
      %p77 = por %p75, %p76
      %p78 = scmp.ne.s32.totalorder %s66, %s67
      %p79 = scmp.eq.s32.totalorder %s22, 3
      %p80 = por %p78, %p79
      %p82 = scmp.ne.s32.totalorder %s67, %s81
      %p83 = scmp.eq.s32.totalorder %s22, 0
      %p84 = por %p82, %p83
      %s86 = sadd.s32 %s85, 1
      %p89 = scmp.eq.s32.totalorder %s16, 3
      %p90 = scmp.ne.s32.totalorder %s85, %s87
      %p91 = scmp.eq.s32.totalorder %s16, 0
      %p92 = por %p90, %p91
      %p93 = scmp.ne.s32.totalorder %s85, %s87
      %p94 = scmp.eq.s32.totalorder %s21, 3
      %p95 = por %p93, %p94
      %p96 = scmp.ne.s32.totalorder %s87, %s88
      %p97 = scmp.eq.s32.totalorder %s21, 0
      %p98 = por %p96, %p97
      %p99 = scmp.ne.s32.totalorder %s87, %s88
      %p100 = scmp.eq.s32.totalorder %s22, 3
      %p101 = por %p99, %p100
      %p103 = scmp.ne.s32.totalorder %s88, %s102
      %p104 = scmp.eq.s32.totalorder %s22, 0
      %p105 = por %p103, %p104
      %s107 = sadd.s32 %s106, 1
      %p110 = scmp.eq.s32.totalorder %s16, 3
      %p111 = scmp.ne.s32.totalorder %s106, %s108
      %p112 = scmp.eq.s32.totalorder %s16, 0
      %p113 = por %p111, %p112
      %p114 = scmp.ne.s32.totalorder %s106, %s108
      %p115 = scmp.eq.s32.totalorder %s21, 3
      %p116 = por %p114, %p115
      %p117 = scmp.ne.s32.totalorder %s108, %s109
      %p118 = scmp.eq.s32.totalorder %s21, 0
      %p119 = por %p117, %p118
      %p120 = scmp.ne.s32.totalorder %s108, %s109
      %p121 = scmp.eq.s32.totalorder %s22, 3
      %p122 = por %p120, %p121
      %p124 = scmp.ne.s32.totalorder %s109, %s123
      %p125 = scmp.eq.s32.totalorder %s22, 0
      %p126 = por %p124, %p125
      %s128 = sadd.s32 %s127, 1
      %p131 = scmp.eq.s32.totalorder %s16, 3
      %p132 = scmp.ne.s32.totalorder %s127, %s129
      %p133 = scmp.eq.s32.totalorder %s16, 0
      %p134 = por %p132, %p133
      %p135 = scmp.ne.s32.totalorder %s127, %s129
      %p136 = scmp.eq.s32.totalorder %s21, 3
      %p137 = por %p135, %p136
      %p138 = scmp.ne.s32.totalorder %s129, %s130
      %p139 = scmp.eq.s32.totalorder %s21, 0
      %p140 = por %p138, %p139
      %p141 = scmp.ne.s32.totalorder %s129, %s130
      %p142 = scmp.eq.s32.totalorder %s22, 3
      %p143 = por %p141, %p142
      %p145 = scmp.ne.s32.totalorder %s130, %s144
      %p146 = scmp.eq.s32.totalorder %s22, 0
      %p147 = por %p145, %p146
      %s149 = sadd.s32 %s148, 1
      %p152 = scmp.eq.s32.totalorder %s16, 3
      %p153 = scmp.ne.s32.totalorder %s148, %s150
      %p154 = scmp.eq.s32.totalorder %s16, 0
      %p155 = por %p153, %p154
      %p156 = scmp.ne.s32.totalorder %s148, %s150
      %p157 = scmp.eq.s32.totalorder %s21, 3
      %p158 = por %p156, %p157
      %p159 = scmp.ne.s32.totalorder %s150, %s151
      %p160 = scmp.eq.s32.totalorder %s21, 0
      %p161 = por %p159, %p160
      %p162 = scmp.ne.s32.totalorder %s150, %s151
      %p163 = scmp.eq.s32.totalorder %s22, 3
      %p164 = por %p162, %p163
      %p166 = scmp.ne.s32.totalorder %s151, %s165
      %p167 = scmp.eq.s32.totalorder %s22, 0
      %p168 = por %p166, %p167
      %s170 = sadd.s32 %s169, 1
      %p173 = scmp.eq.s32.totalorder %s16, 3
      %p174 = scmp.ne.s32.totalorder %s169, %s171
      %p175 = scmp.eq.s32.totalorder %s16, 0
      %p176 = por %p174, %p175
      %p177 = scmp.ne.s32.totalorder %s169, %s171
      %p178 = scmp.eq.s32.totalorder %s21, 3
      %p179 = por %p177, %p178
      %p180 = scmp.ne.s32.totalorder %s171, %s172
      %p181 = scmp.eq.s32.totalorder %s21, 0
      %p182 = por %p180, %p181
      %p183 = scmp.ne.s32.totalorder %s171, %s172
      %p184 = scmp.eq.s32.totalorder %s22, 3
      %p185 = por %p183, %p184
      %p187 = scmp.ne.s32.totalorder %s172, %s186
      %p188 = scmp.eq.s32.totalorder %s22, 0
      %p189 = por %p187, %p188
      %s190 = ssub.s32 %s23, %s35
      %s191 = ssub.s32 %s24, %s31
      %s192 = sor.u32 %s190, %s191
      %p193 = scmp.eq.s32.totalorder %s192, 0
      %s195 = sadd.s32 %s194, 1
      %s196 = scalar_select %p193, %s194, %s195
      %p199 = pneg %p193
      %p200 = scmp.eq.s32.totalorder %s16, 3
      %p201 = por %p199, %p200
      %p202 = scmp.ne.s32.totalorder %s194, %s197
      %p203 = scmp.eq.s32.totalorder %s16, 0
      %p204 = por %p202, %p203
      %p205 = scmp.ne.s32.totalorder %s194, %s197
      %p206 = scmp.eq.s32.totalorder %s21, 3
      %p207 = por %p205, %p206
      %p208 = scmp.ne.s32.totalorder %s197, %s198
      %p209 = scmp.eq.s32.totalorder %s21, 0
      %p210 = por %p208, %p209
      %p211 = scmp.ne.s32.totalorder %s197, %s198
      %p212 = scmp.eq.s32.totalorder %s22, 3
      %p213 = por %p211, %p212
      %p215 = scmp.ne.s32.totalorder %s198, %s214
      %p216 = scmp.eq.s32.totalorder %s22, 0
      %p217 = por %p215, %p216
      %p218 = scmp.le.s32.totalorder 1, %s16
      %p219 = scmp.lt.s32.totalorder %s16, 5
      %p220 = pnand %p218, %p219
      %p221 = pneg %p220
      // Predicated region
      $region9: #{tpu_custom_call.1} parent=5 // pred_check
        _
      $region10: #{tpu_custom_call.1} parent=5 // pred_check_branch
        %223 = sbr.rel (%p220) target = $region12
      $region11: #{tpu_custom_call.1} parent=5 // pred_region
        %s224 = ssub.s32 %s16, 1
        // Predicated region
        $region13: #{tpu_custom_call.1} parent=11 // pred_check
          %p225 = pneg %p77
        $region14: #{tpu_custom_call.1} parent=11 // pred_check_branch
          %227 = sbr.rel (%p225) target = $region16
        $region15: #{tpu_custom_call.1} parent=11 // pred_region
          _
        $region16: #{tpu_custom_call.1} parent=11 // pred_fallthru
          _
        // Predicated region
        $region17: #{tpu_custom_call.1} parent=11 // pred_check
          %p228 = pneg %p98
        $region18: #{tpu_custom_call.1} parent=11 // pred_check_branch
          %230 = sbr.rel (%p228) target = $region20
        $region19: #{tpu_custom_call.1} parent=11 // pred_region
          _
        $region20: #{tpu_custom_call.1} parent=11 // pred_fallthru
          _
        // Predicated region
        $region21: #{tpu_custom_call.1} parent=11 // pred_check
          %p231 = pneg %p119
        $region22: #{tpu_custom_call.1} parent=11 // pred_check_branch
          %233 = sbr.rel (%p231) target = $region24
        $region23: #{tpu_custom_call.1} parent=11 // pred_region
          _
        $region24: #{tpu_custom_call.1} parent=11 // pred_fallthru
          _
        // Predicated region
        $region25: #{tpu_custom_call.1} parent=11 // pred_check
          %p234 = pneg %p140
        $region26: #{tpu_custom_call.1} parent=11 // pred_check_branch
          %236 = sbr.rel (%p234) target = $region28
        $region27: #{tpu_custom_call.1} parent=11 // pred_region
          _
        $region28: #{tpu_custom_call.1} parent=11 // pred_fallthru
          _
        // Predicated region
        $region29: #{tpu_custom_call.1} parent=11 // pred_check
          %p237 = pneg %p161
        $region30: #{tpu_custom_call.1} parent=11 // pred_check_branch
          %239 = sbr.rel (%p237) target = $region32
        $region31: #{tpu_custom_call.1} parent=11 // pred_region
          _
        $region32: #{tpu_custom_call.1} parent=11 // pred_fallthru
          _
        // Predicated region
        $region33: #{tpu_custom_call.1} parent=11 // pred_check
          %p240 = pneg %p182
        $region34: #{tpu_custom_call.1} parent=11 // pred_check_branch
          %242 = sbr.rel (%p240) target = $region36
        $region35: #{tpu_custom_call.1} parent=11 // pred_region
          _
        $region36: #{tpu_custom_call.1} parent=11 // pred_fallthru
          _
      $region12: #{tpu_custom_call.1} parent=5 // pred_fallthru
        _
      %p243 = scmp.lt.s32.totalorder %s16, 4
      // Predicated region
      $region37: #{tpu_custom_call.1} parent=5 // pred_check
        %p244 = pneg %p243
      $region38: #{tpu_custom_call.1} parent=5 // pred_check_branch
        %246 = sbr.rel (%p244) target = $region40
      $region39: #{tpu_custom_call.1} parent=5 // pred_region
        // Predicated region
        $region41: #{tpu_custom_call.1} parent=39 // pred_check
          %p247 = pneg %p50
        $region42: #{tpu_custom_call.1} parent=39 // pred_check_branch
          %249 = sbr.rel (%p247) target = $region44
        $region43: #{tpu_custom_call.1} parent=39 // pred_region
          %p250 = scmp.lt.s32.totalorder %s23, 1
          %s251 = scalar_select %p250, %s23, 1
          %p252 = scmp.lt.s32.totalorder %s24, 1
          %s253 = scalar_select %p252, %s24, 1
          %s254 = smul.addr %s251, 2
          %s255 = sadd.s32 %s253, %s254
          %s256 = smul.addr %s255, 8
          %s257 = scalar_lea.vmem %s0, %s256
        $region44: #{tpu_custom_call.1} parent=39 // pred_fallthru
          _
      $region40: #{tpu_custom_call.1} parent=5 // pred_fallthru
        _
      %p258 = scmp.le.s32.totalorder 1, %s16
      %p259 = scmp.lt.s32.totalorder %s16, 5
      %p260 = pnand %p258, %p259
      %p261 = pneg %p260
      // Predicated region
      $region45: #{tpu_custom_call.1} parent=5 // pred_check
        _
      $region46: #{tpu_custom_call.1} parent=5 // pred_check_branch
        %263 = sbr.rel (%p260) target = $region48
      $region47: #{tpu_custom_call.1} parent=5 // pred_region
        %s264 = ssub.s32 %s16, 1
        %p265 = scmp.lt.s32.totalorder %s25, 1
        %s266 = scalar_select %p265, %s25, 1
        %p267 = scmp.lt.s32.totalorder %s26, 1
        %s268 = scalar_select %p267, %s26, 1
        %s269 = smul.addr %s266, 2
        %s270 = sadd.s32 %s268, %s269
        %s271 = smul.addr %s270, 8
        %s272 = scalar_lea.vmem %s0, %s271
        %p273 = pneg %p56
        %p274 = pneg %p53
        %p275 = pneg %p77
        %p276 = pneg %p74
        %p277 = pneg %p98
        %p278 = pneg %p95
        %p279 = pneg %p119
        %p280 = pneg %p116
        %p281 = pneg %p140
        %p282 = pneg %p137
        %p283 = pneg %p161
        %p284 = pneg %p158
        %p285 = pneg %p182
        %p286 = pneg %p179
        %p287 = pneg %p210
        %p288 = pneg %p207
        %s289 = sand.u32 %s197, 1
        %s290 = scalar_lea.sflag [#allocation5], %s289
        %s291 = sand.u32 %s197, 1
        %s292 = smul.addr %s291, 16
        %s293 = scalar_lea.vmem [#allocation4], %s292
        %p294 = scmp.lt.s32.totalorder %s25, 1
        %s295 = scalar_select %p294, %s25, 1
        %p296 = scmp.lt.s32.totalorder %s26, 1
        %s297 = scalar_select %p296, %s26, 1
        %s298 = smul.addr %s295, 2
        %s299 = sadd.s32 %s297, %s298
        %s300 = smul.addr %s299, 8
        %s301 = scalar_lea.vmem %s0, %s300
        %p302 = scmp.eq.s32.totalorder %s26, 0
        // Predicated region
        $region49: #{tpu_custom_call.1} parent=47 // pred_check
          %p303 = pneg %p302
        $region50: #{tpu_custom_call.1} parent=47 // pred_check_branch
          %305 = sbr.rel (%p303) target = $region52
        $region51: #{tpu_custom_call.1} parent=47 // pred_region
          %vm306 = vcmask 1048512
          %307 = vst.msk [vmem:[#allocation2] sm:$0xff] %vm306, 0.0
          %308 = vst.msk [vmem:[#allocation3] sm:$0xff] %vm306, 0.0
          %309 = vst.msk [vmem:[#allocation3 + $0x10] sm:$0xff] %vm306, 0.0
        $region52: #{tpu_custom_call.1} parent=47 // pred_fallthru
          _
        %v310 = vld [vmem:[%s301] sm:$0xff]
        %311 = vst [vmem:[#allocation2 + $0x8] sm:$0xff] %v310
        %v312 = vld [vmem:[%s1] sm:$0xff]
        %v313 = vld [vmem:[%s1 + $0x8] sm:$0xff]
        %v314 = vld [vmem:[#allocation2] sm:$0xff]
        %v315 = vld [vmem:[#allocation2 + $0x8] sm:$0xff]
        %s316 = scalar_lea.vmem %s1, 16
        %v317 = vld [vmem:[%s316] sm:$0xff]
        %v318 = vld [vmem:[%s316 + $0x8] sm:$0xff]
        %321 = vrot.lane.b32.xlu0 %v314, 4
        %v322 = vpop.permute.xlu0 %321
        %323 = vrot.lane.b32.xlu0 %v315, 4
        %v324 = vpop.permute.xlu0 %323
        %vm325 = vcmask 31744
        %v326 = vsel %vm325, %v322, %v324
        %vm328 = vcmask 64512
        %v330 = vsel %vm328, %v317, 0
        %v333 = vsel %vm328, %v318, 0
        %335 = vmatprep.subr.mxu0 0.0
        %336 = vmatpush1.msra.mxu0 0.0
        %337 = vmatprep.subr.mxu0 0.0
        %338 = vmatpush1.msra.mxu0 0.0
        %339 = vmatprep.subr.mxu0 0.0
        %340 = vmatpush1.msra.mxu0 0.0
        %341 = vmatprep.subr.mxu0 0.0
        %342 = vmatpush1.msra.mxu0 0.0
        %343 = vmatprep.subr.mxu0 0.0
        %344 = vmatpush1.msra.mxu0 0.0
        %345 = vmatprep.subr.mxu0 0.0
        %346 = vmatpush1.msra.mxu0 0.0
        %347 = vmatprep.subr.mxu0 0.0
        %348 = vmatpush1.msra.mxu0 0.0
        %349 = vmatprep.subr.mxu0 0.0
        %350 = vmatpush1.msra.mxu0 0.0
        %351 = vmatprep.subr.mxu0 0.0
        %352 = vmatpush1.msra.mxu0 0.0
        %353 = vmatprep.subr.mxu0 0.0
        %354 = vmatpush1.msra.mxu0 0.0
        %355 = vmatprep.subr.mxu0 0.0
        %356 = vmatpush1.msra.mxu0 0.0
        %357 = vmatprep.subr.mxu0 0.0
        %358 = vmatpush1.msra.mxu0 0.0
        %359 = vmatprep.subr.mxu0 0.0
        %360 = vmatpush1.msra.mxu0 0.0
        %361 = vmatprep.subr.mxu0 0.0
        %362 = vmatpush1.msra.mxu0 0.0
        %363 = vmatprep.subr.mxu0 0.0
        %364 = vmatpush1.msra.mxu0 0.0
        %365 = vmatprep.subr.mxu0 0.0
        %366 = vmatpush1.msra.mxu0 %v326
        %367 = vmatprep.subr.mxu0 0.0
        %368 = vmatpush2.msra.mxu0 0.0
        %369 = vmatprep.subr.mxu0 0.0
        %370 = vmatpush2.msra.mxu0 0.0
        %371 = vmatprep.subr.mxu0 0.0
        %372 = vmatpush2.msra.mxu0 0.0
        %373 = vmatprep.subr.mxu0 0.0
        %374 = vmatpush2.msra.mxu0 0.0
        %375 = vmatprep.subr.mxu0 0.0
        %376 = vmatpush2.msra.mxu0 0.0
        %377 = vmatprep.subr.mxu0 0.0
        %378 = vmatpush2.msra.mxu0 0.0
        %379 = vmatprep.subr.mxu0 0.0
        %380 = vmatpush2.msra.mxu0 0.0
        %381 = vmatprep.subr.mxu0 0.0
        %382 = vmatpush2.msra.mxu0 0.0
        %383 = vmatprep.subr.mxu0 0.0
        %384 = vmatpush2.msra.mxu0 0.0
        %385 = vmatprep.subr.mxu0 0.0
        %386 = vmatpush2.msra.mxu0 0.0
        %387 = vmatprep.subr.mxu0 0.0
        %388 = vmatpush2.msra.mxu0 0.0
        %389 = vmatprep.subr.mxu0 0.0
        %390 = vmatpush2.msra.mxu0 0.0
        %391 = vmatprep.subr.mxu0 0.0
        %392 = vmatpush2.msra.mxu0 0.0
        %393 = vmatprep.subr.mxu0 0.0
        %394 = vmatpush2.msra.mxu0 0.0
        %395 = vmatprep.subr.mxu0 0.0
        %396 = vmatpush2.msra.mxu0 0.0
        %397 = vmatprep.subr.mxu0 0.0
        %398 = vmatpush2.msra.mxu0 0.0
        %399 = vmatprep.mubr.f32.mxu0 0.0
        %400 = vmatmul.mubr.f32.gmra.mxu0 %v330
        %v401 = vpop.f32.mrf.mxu0
        %v402 = vadd.f32 0.0, %v401
        %v403 = vpop.f32.mrf.mxu0
        %404 = vmatprep.mubr.f32.mxu0 0.0
        %405 = vmatmul.mubr.f32.gmra.mxu0 %v333
        %v406 = vpop.f32.mrf.mxu0
        %v407 = vadd.f32 0.0, %v406
        %v408 = vpop.f32.mrf.mxu0
        %409 = vdwg.mxu0
        %410 = vrot.lane.b32.xlu0 %v314, 8
        %v411 = vpop.permute.xlu0 %410
        %412 = vrot.lane.b32.xlu0 %v315, 8
        %v413 = vpop.permute.xlu0 %412
        %v414 = vsel %vm328, %v411, %v413
        %v417 = vsel %vm328, %v312, 0
        %v420 = vsel %vm328, %v313, 0
        %422 = vmatprep.subr.mxu0 0.0
        %423 = vmatpush1.msra.mxu0 0.0
        %424 = vmatprep.subr.mxu0 0.0
        %425 = vmatpush1.msra.mxu0 0.0
        %426 = vmatprep.subr.mxu0 0.0
        %427 = vmatpush1.msra.mxu0 0.0
        %428 = vmatprep.subr.mxu0 0.0
        %429 = vmatpush1.msra.mxu0 0.0
        %430 = vmatprep.subr.mxu0 0.0
        %431 = vmatpush1.msra.mxu0 0.0
        %432 = vmatprep.subr.mxu0 0.0
        %433 = vmatpush1.msra.mxu0 0.0
        %434 = vmatprep.subr.mxu0 0.0
        %435 = vmatpush1.msra.mxu0 0.0
        %436 = vmatprep.subr.mxu0 0.0
        %437 = vmatpush1.msra.mxu0 0.0
        %438 = vmatprep.subr.mxu0 0.0
        %439 = vmatpush1.msra.mxu0 0.0
        %440 = vmatprep.subr.mxu0 0.0
        %441 = vmatpush1.msra.mxu0 0.0
        %442 = vmatprep.subr.mxu0 0.0
        %443 = vmatpush1.msra.mxu0 0.0
        %444 = vmatprep.subr.mxu0 0.0
        %445 = vmatpush1.msra.mxu0 0.0
        %446 = vmatprep.subr.mxu0 0.0
        %447 = vmatpush1.msra.mxu0 0.0
        %448 = vmatprep.subr.mxu0 0.0
        %449 = vmatpush1.msra.mxu0 0.0
        %450 = vmatprep.subr.mxu0 0.0
        %451 = vmatpush1.msra.mxu0 0.0
        %452 = vmatprep.subr.mxu0 0.0
        %453 = vmatpush1.msra.mxu0 %v414
        %454 = vmatprep.subr.mxu0 0.0
        %455 = vmatpush2.msra.mxu0 0.0
        %456 = vmatprep.subr.mxu0 0.0
        %457 = vmatpush2.msra.mxu0 0.0
        %458 = vmatprep.subr.mxu0 0.0
        %459 = vmatpush2.msra.mxu0 0.0
        %460 = vmatprep.subr.mxu0 0.0
        %461 = vmatpush2.msra.mxu0 0.0
        %462 = vmatprep.subr.mxu0 0.0
        %463 = vmatpush2.msra.mxu0 0.0
        %464 = vmatprep.subr.mxu0 0.0
        %465 = vmatpush2.msra.mxu0 0.0
        %466 = vmatprep.subr.mxu0 0.0
        %467 = vmatpush2.msra.mxu0 0.0
        %468 = vmatprep.subr.mxu0 0.0
        %469 = vmatpush2.msra.mxu0 0.0
        %470 = vmatprep.subr.mxu0 0.0
        %471 = vmatpush2.msra.mxu0 0.0
        %472 = vmatprep.subr.mxu0 0.0
        %473 = vmatpush2.msra.mxu0 0.0
        %474 = vmatprep.subr.mxu0 0.0
        %475 = vmatpush2.msra.mxu0 0.0
        %476 = vmatprep.subr.mxu0 0.0
        %477 = vmatpush2.msra.mxu0 0.0
        %478 = vmatprep.subr.mxu0 0.0
        %479 = vmatpush2.msra.mxu0 0.0
        %480 = vmatprep.subr.mxu0 0.0
        %481 = vmatpush2.msra.mxu0 0.0
        %482 = vmatprep.subr.mxu0 0.0
        %483 = vmatpush2.msra.mxu0 0.0
        %484 = vmatprep.subr.mxu0 0.0
        %485 = vmatpush2.msra.mxu0 0.0
        %486 = vmatprep.mubr.f32.mxu0 0.0
        %487 = vmatmul.mubr.f32.gmra.mxu0 %v417
        %v488 = vpop.f32.mrf.mxu0
        %v489 = vadd.f32 %v402, %v488
        %v490 = vpop.f32.mrf.mxu0
        %491 = vmatprep.mubr.f32.mxu0 0.0
        %492 = vmatmul.mubr.f32.gmra.mxu0 %v420
        %v493 = vpop.f32.mrf.mxu0
        %v494 = vadd.f32 %v407, %v493
        %v495 = vpop.f32.mrf.mxu0
        %496 = vdwg.mxu0
        %s497 = scalar_lea.vmem %s1, 32
        %v498 = vld [vmem:[%s497] sm:$0xff]
        %v499 = vld [vmem:[%s497 + $0x8] sm:$0xff]
        %v501 = vsel %vm328, %v498, 0
        %v504 = vsel %vm328, %v499, 0
        %506 = vmatprep.subr.mxu0 0.0
        %507 = vmatpush1.msra.mxu0 0.0
        %508 = vmatprep.subr.mxu0 0.0
        %509 = vmatpush1.msra.mxu0 0.0
        %510 = vmatprep.subr.mxu0 0.0
        %511 = vmatpush1.msra.mxu0 0.0
        %512 = vmatprep.subr.mxu0 0.0
        %513 = vmatpush1.msra.mxu0 0.0
        %514 = vmatprep.subr.mxu0 0.0
        %515 = vmatpush1.msra.mxu0 0.0
        %516 = vmatprep.subr.mxu0 0.0
        %517 = vmatpush1.msra.mxu0 0.0
        %518 = vmatprep.subr.mxu0 0.0
        %519 = vmatpush1.msra.mxu0 0.0
        %520 = vmatprep.subr.mxu0 0.0
        %521 = vmatpush1.msra.mxu0 0.0
        %522 = vmatprep.subr.mxu0 0.0
        %523 = vmatpush1.msra.mxu0 0.0
        %524 = vmatprep.subr.mxu0 0.0
        %525 = vmatpush1.msra.mxu0 0.0
        %526 = vmatprep.subr.mxu0 0.0
        %527 = vmatpush1.msra.mxu0 0.0
        %528 = vmatprep.subr.mxu0 0.0
        %529 = vmatpush1.msra.mxu0 0.0
        %530 = vmatprep.subr.mxu0 0.0
        %531 = vmatpush1.msra.mxu0 0.0
        %532 = vmatprep.subr.mxu0 0.0
        %533 = vmatpush1.msra.mxu0 0.0
        %534 = vmatprep.subr.mxu0 0.0
        %535 = vmatpush1.msra.mxu0 0.0
        %536 = vmatprep.subr.mxu0 0.0
        %537 = vmatpush1.msra.mxu0 %v315
        %538 = vmatprep.subr.mxu0 0.0
        %539 = vmatpush2.msra.mxu0 0.0
        %540 = vmatprep.subr.mxu0 0.0
        %541 = vmatpush2.msra.mxu0 0.0
        %542 = vmatprep.subr.mxu0 0.0
        %543 = vmatpush2.msra.mxu0 0.0
        %544 = vmatprep.subr.mxu0 0.0
        %545 = vmatpush2.msra.mxu0 0.0
        %546 = vmatprep.subr.mxu0 0.0
        %547 = vmatpush2.msra.mxu0 0.0
        %548 = vmatprep.subr.mxu0 0.0
        %549 = vmatpush2.msra.mxu0 0.0
        %550 = vmatprep.subr.mxu0 0.0
        %551 = vmatpush2.msra.mxu0 0.0
        %552 = vmatprep.subr.mxu0 0.0
        %553 = vmatpush2.msra.mxu0 0.0
        %554 = vmatprep.subr.mxu0 0.0
        %555 = vmatpush2.msra.mxu0 0.0
        %556 = vmatprep.subr.mxu0 0.0
        %557 = vmatpush2.msra.mxu0 0.0
        %558 = vmatprep.subr.mxu0 0.0
        %559 = vmatpush2.msra.mxu0 0.0
        %560 = vmatprep.subr.mxu0 0.0
        %561 = vmatpush2.msra.mxu0 0.0
        %562 = vmatprep.subr.mxu0 0.0
        %563 = vmatpush2.msra.mxu0 0.0
        %564 = vmatprep.subr.mxu0 0.0
        %565 = vmatpush2.msra.mxu0 0.0
        %566 = vmatprep.subr.mxu0 0.0
        %567 = vmatpush2.msra.mxu0 0.0
        %568 = vmatprep.subr.mxu0 0.0
        %569 = vmatpush2.msra.mxu0 0.0
        %570 = vmatprep.mubr.f32.mxu0 0.0
        %571 = vmatmul.mubr.f32.gmra.mxu0 %v501
        %v572 = vpop.f32.mrf.mxu0
        %v573 = vadd.f32 0.0, %v572
        %v574 = vpop.f32.mrf.mxu0
        %575 = vmatprep.mubr.f32.mxu0 0.0
        %576 = vmatmul.mubr.f32.gmra.mxu0 %v504
        %v577 = vpop.f32.mrf.mxu0
        %v578 = vadd.f32 0.0, %v577
        %v579 = vpop.f32.mrf.mxu0
        %580 = vdwg.mxu0
        %v581 = vadd.f32 %v489, %v573
        %v582 = vadd.f32 %v494, %v578
        %v583 = vld [vmem:[%s2] sm:$0xff]
        %v584 = vld [vmem:[%s2 + $0x8] sm:$0xff]
        %586 = vset.pattern.permute.xlu0 0
        %587 = vperm.xlu0 %586, %v583
        %v588 = vpop.permute.xlu0 %587
        %591 = vset.pattern.permute.xlu0 0
        %592 = vperm.xlu0 %591, %v584
        %v593 = vpop.permute.xlu0 %592
        %v595 = vadd.f32 %v581, %v588
        %v596 = vadd.f32 %v582, %v593
        %v597 = vmax.f32 %v595, 0.0
        %v598 = vmax.f32 %v596, 0.0
        %599 = vst [vmem:[#allocation3 + $0x8] sm:$0xff] %v597
        %600 = vst [vmem:[#allocation3 + $0x18] sm:$0xff] %v598
        %v601 = vld [vmem:[%s3] sm:$0xff]
        %v602 = vld [vmem:[%s3 + $0x8] sm:$0xff]
        %v603 = vld [vmem:[#allocation3] sm:$0xff]
        %v604 = vld [vmem:[#allocation3 + $0x8] sm:$0xff]
        %v605 = vld [vmem:[#allocation3 + $0x10] sm:$0xff]
        %v606 = vld [vmem:[#allocation3 + $0x18] sm:$0xff]
        %s607 = scalar_lea.vmem %s3, 16
        %v608 = vld [vmem:[%s607] sm:$0xff]
        %v609 = vld [vmem:[%s607 + $0x8] sm:$0xff]
        %614 = vrot.lane.b32.xlu0 %v603, 4
        %v615 = vpop.permute.xlu0 %614
        %616 = vrot.lane.b32.xlu0 %v604, 4
        %v617 = vpop.permute.xlu0 %616
        %618 = vrot.lane.b32.xlu0 %v605, 4
        %v619 = vpop.permute.xlu0 %618
        %620 = vrot.lane.b32.xlu0 %v606, 4
        %v621 = vpop.permute.xlu0 %620
        %v622 = vsel %vm325, %v615, %v617
        %v623 = vsel %vm325, %v619, %v621
        %vm626 = vcmask 130048
        %v628 = vsel %vm626, %v608, 0
        %v631 = vsel %vm626, %v609, 0
        %633 = vmatprep.subr.mxu0 0.0
        %634 = vmatpush1.msra.mxu0 0.0
        %635 = vmatprep.subr.mxu0 0.0
        %636 = vmatpush1.msra.mxu0 0.0
        %637 = vmatprep.subr.mxu0 0.0
        %638 = vmatpush1.msra.mxu0 0.0
        %639 = vmatprep.subr.mxu0 0.0
        %640 = vmatpush1.msra.mxu0 0.0
        %641 = vmatprep.subr.mxu0 0.0
        %642 = vmatpush1.msra.mxu0 0.0
        %643 = vmatprep.subr.mxu0 0.0
        %644 = vmatpush1.msra.mxu0 0.0
        %645 = vmatprep.subr.mxu0 0.0
        %646 = vmatpush1.msra.mxu0 0.0
        %647 = vmatprep.subr.mxu0 0.0
        %648 = vmatpush1.msra.mxu0 0.0
        %649 = vmatprep.subr.mxu0 0.0
        %650 = vmatpush1.msra.mxu0 0.0
        %651 = vmatprep.subr.mxu0 0.0
        %652 = vmatpush1.msra.mxu0 0.0
        %653 = vmatprep.subr.mxu0 0.0
        %654 = vmatpush1.msra.mxu0 0.0
        %655 = vmatprep.subr.mxu0 0.0
        %656 = vmatpush1.msra.mxu0 0.0
        %657 = vmatprep.subr.mxu0 0.0
        %658 = vmatpush1.msra.mxu0 0.0
        %659 = vmatprep.subr.mxu0 0.0
        %660 = vmatpush1.msra.mxu0 0.0
        %661 = vmatprep.subr.mxu0 0.0
        %662 = vmatpush1.msra.mxu0 %v623
        %663 = vmatprep.subr.mxu0 0.0
        %664 = vmatpush1.msra.mxu0 %v622
        %665 = vmatprep.subr.mxu0 0.0
        %666 = vmatpush2.msra.mxu0 0.0
        %667 = vmatprep.subr.mxu0 0.0
        %668 = vmatpush2.msra.mxu0 0.0
        %669 = vmatprep.subr.mxu0 0.0
        %670 = vmatpush2.msra.mxu0 0.0
        %671 = vmatprep.subr.mxu0 0.0
        %672 = vmatpush2.msra.mxu0 0.0
        %673 = vmatprep.subr.mxu0 0.0
        %674 = vmatpush2.msra.mxu0 0.0
        %675 = vmatprep.subr.mxu0 0.0
        %676 = vmatpush2.msra.mxu0 0.0
        %677 = vmatprep.subr.mxu0 0.0
        %678 = vmatpush2.msra.mxu0 0.0
        %679 = vmatprep.subr.mxu0 0.0
        %680 = vmatpush2.msra.mxu0 0.0
        %681 = vmatprep.subr.mxu0 0.0
        %682 = vmatpush2.msra.mxu0 0.0
        %683 = vmatprep.subr.mxu0 0.0
        %684 = vmatpush2.msra.mxu0 0.0
        %685 = vmatprep.subr.mxu0 0.0
        %686 = vmatpush2.msra.mxu0 0.0
        %687 = vmatprep.subr.mxu0 0.0
        %688 = vmatpush2.msra.mxu0 0.0
        %689 = vmatprep.subr.mxu0 0.0
        %690 = vmatpush2.msra.mxu0 0.0
        %691 = vmatprep.subr.mxu0 0.0
        %692 = vmatpush2.msra.mxu0 0.0
        %693 = vmatprep.subr.mxu0 0.0
        %694 = vmatpush2.msra.mxu0 0.0
        %695 = vmatprep.subr.mxu0 0.0
        %696 = vmatpush2.msra.mxu0 0.0
        %697 = vmatprep.mubr.f32.mxu0 0.0
        %698 = vmatmul.mubr.f32.gmra.mxu0 %v628
        %v699 = vpop.f32.mrf.mxu0
        %v700 = vadd.f32 0.0, %v699
        %v701 = vpop.f32.mrf.mxu0
        %702 = vmatprep.mubr.f32.mxu0 0.0
        %703 = vmatmul.mubr.f32.gmra.mxu0 %v631
        %v704 = vpop.f32.mrf.mxu0
        %v705 = vadd.f32 0.0, %v704
        %v706 = vpop.f32.mrf.mxu0
        %707 = vdwg.mxu0
        %708 = vrot.lane.b32.xlu0 %v603, 8
        %v709 = vpop.permute.xlu0 %708
        %710 = vrot.lane.b32.xlu0 %v604, 8
        %v711 = vpop.permute.xlu0 %710
        %712 = vrot.lane.b32.xlu0 %v605, 8
        %v713 = vpop.permute.xlu0 %712
        %714 = vrot.lane.b32.xlu0 %v606, 8
        %v715 = vpop.permute.xlu0 %714
        %v716 = vsel %vm328, %v709, %v711
        %v717 = vsel %vm328, %v713, %v715
        %v721 = vsel %vm626, %v601, 0
        %v724 = vsel %vm626, %v602, 0
        %726 = vmatprep.subr.mxu0 0.0
        %727 = vmatpush1.msra.mxu0 0.0
        %728 = vmatprep.subr.mxu0 0.0
        %729 = vmatpush1.msra.mxu0 0.0
        %730 = vmatprep.subr.mxu0 0.0
        %731 = vmatpush1.msra.mxu0 0.0
        %732 = vmatprep.subr.mxu0 0.0
        %733 = vmatpush1.msra.mxu0 0.0
        %734 = vmatprep.subr.mxu0 0.0
        %735 = vmatpush1.msra.mxu0 0.0
        %736 = vmatprep.subr.mxu0 0.0
        %737 = vmatpush1.msra.mxu0 0.0
        %738 = vmatprep.subr.mxu0 0.0
        %739 = vmatpush1.msra.mxu0 0.0
        %740 = vmatprep.subr.mxu0 0.0
        %741 = vmatpush1.msra.mxu0 0.0
        %742 = vmatprep.subr.mxu0 0.0
        %743 = vmatpush1.msra.mxu0 0.0
        %744 = vmatprep.subr.mxu0 0.0
        %745 = vmatpush1.msra.mxu0 0.0
        %746 = vmatprep.subr.mxu0 0.0
        %747 = vmatpush1.msra.mxu0 0.0
        %748 = vmatprep.subr.mxu0 0.0
        %749 = vmatpush1.msra.mxu0 0.0
        %750 = vmatprep.subr.mxu0 0.0
        %751 = vmatpush1.msra.mxu0 0.0
        %752 = vmatprep.subr.mxu0 0.0
        %753 = vmatpush1.msra.mxu0 0.0
        %754 = vmatprep.subr.mxu0 0.0
        %755 = vmatpush1.msra.mxu0 %v717
        %756 = vmatprep.subr.mxu0 0.0
        %757 = vmatpush1.msra.mxu0 %v716
        %758 = vmatprep.subr.mxu0 0.0
        %759 = vmatpush2.msra.mxu0 0.0
        %760 = vmatprep.subr.mxu0 0.0
        %761 = vmatpush2.msra.mxu0 0.0
        %762 = vmatprep.subr.mxu0 0.0
        %763 = vmatpush2.msra.mxu0 0.0
        %764 = vmatprep.subr.mxu0 0.0
        %765 = vmatpush2.msra.mxu0 0.0
        %766 = vmatprep.subr.mxu0 0.0
        %767 = vmatpush2.msra.mxu0 0.0
        %768 = vmatprep.subr.mxu0 0.0
        %769 = vmatpush2.msra.mxu0 0.0
        %770 = vmatprep.subr.mxu0 0.0
        %771 = vmatpush2.msra.mxu0 0.0
        %772 = vmatprep.subr.mxu0 0.0
        %773 = vmatpush2.msra.mxu0 0.0
        %774 = vmatprep.subr.mxu0 0.0
        %775 = vmatpush2.msra.mxu0 0.0
        %776 = vmatprep.subr.mxu0 0.0
        %777 = vmatpush2.msra.mxu0 0.0
        %778 = vmatprep.subr.mxu0 0.0
        %779 = vmatpush2.msra.mxu0 0.0
        %780 = vmatprep.subr.mxu0 0.0
        %781 = vmatpush2.msra.mxu0 0.0
        %782 = vmatprep.subr.mxu0 0.0
        %783 = vmatpush2.msra.mxu0 0.0
        %784 = vmatprep.subr.mxu0 0.0
        %785 = vmatpush2.msra.mxu0 0.0
        %786 = vmatprep.subr.mxu0 0.0
        %787 = vmatpush2.msra.mxu0 0.0
        %788 = vmatprep.subr.mxu0 0.0
        %789 = vmatpush2.msra.mxu0 0.0
        %790 = vmatprep.mubr.f32.mxu0 0.0
        %791 = vmatmul.mubr.f32.gmra.mxu0 %v721
        %v792 = vpop.f32.mrf.mxu0
        %v793 = vadd.f32 %v700, %v792
        %v794 = vpop.f32.mrf.mxu0
        %795 = vmatprep.mubr.f32.mxu0 0.0
        %796 = vmatmul.mubr.f32.gmra.mxu0 %v724
        %v797 = vpop.f32.mrf.mxu0
        %v798 = vadd.f32 %v705, %v797
        %v799 = vpop.f32.mrf.mxu0
        %800 = vdwg.mxu0
        %s801 = scalar_lea.vmem %s3, 32
        %v802 = vld [vmem:[%s801] sm:$0xff]
        %v803 = vld [vmem:[%s801 + $0x8] sm:$0xff]
        %v805 = vsel %vm626, %v802, 0
        %v808 = vsel %vm626, %v803, 0
        %810 = vmatprep.subr.mxu0 0.0
        %811 = vmatpush1.msra.mxu0 0.0
        %812 = vmatprep.subr.mxu0 0.0
        %813 = vmatpush1.msra.mxu0 0.0
        %814 = vmatprep.subr.mxu0 0.0
        %815 = vmatpush1.msra.mxu0 0.0
        %816 = vmatprep.subr.mxu0 0.0
        %817 = vmatpush1.msra.mxu0 0.0
        %818 = vmatprep.subr.mxu0 0.0
        %819 = vmatpush1.msra.mxu0 0.0
        %820 = vmatprep.subr.mxu0 0.0
        %821 = vmatpush1.msra.mxu0 0.0
        %822 = vmatprep.subr.mxu0 0.0
        %823 = vmatpush1.msra.mxu0 0.0
        %824 = vmatprep.subr.mxu0 0.0
        %825 = vmatpush1.msra.mxu0 0.0
        %826 = vmatprep.subr.mxu0 0.0
        %827 = vmatpush1.msra.mxu0 0.0
        %828 = vmatprep.subr.mxu0 0.0
        %829 = vmatpush1.msra.mxu0 0.0
        %830 = vmatprep.subr.mxu0 0.0
        %831 = vmatpush1.msra.mxu0 0.0
        %832 = vmatprep.subr.mxu0 0.0
        %833 = vmatpush1.msra.mxu0 0.0
        %834 = vmatprep.subr.mxu0 0.0
        %835 = vmatpush1.msra.mxu0 0.0
        %836 = vmatprep.subr.mxu0 0.0
        %837 = vmatpush1.msra.mxu0 0.0
        %838 = vmatprep.subr.mxu0 0.0
        %839 = vmatpush1.msra.mxu0 %v606
        %840 = vmatprep.subr.mxu0 0.0
        %841 = vmatpush1.msra.mxu0 %v604
        %842 = vmatprep.subr.mxu0 0.0
        %843 = vmatpush2.msra.mxu0 0.0
        %844 = vmatprep.subr.mxu0 0.0
        %845 = vmatpush2.msra.mxu0 0.0
        %846 = vmatprep.subr.mxu0 0.0
        %847 = vmatpush2.msra.mxu0 0.0
        %848 = vmatprep.subr.mxu0 0.0
        %849 = vmatpush2.msra.mxu0 0.0
        %850 = vmatprep.subr.mxu0 0.0
        %851 = vmatpush2.msra.mxu0 0.0
        %852 = vmatprep.subr.mxu0 0.0
        %853 = vmatpush2.msra.mxu0 0.0
        %854 = vmatprep.subr.mxu0 0.0
        %855 = vmatpush2.msra.mxu0 0.0
        %856 = vmatprep.subr.mxu0 0.0
        %857 = vmatpush2.msra.mxu0 0.0
        %858 = vmatprep.subr.mxu0 0.0
        %859 = vmatpush2.msra.mxu0 0.0
        %860 = vmatprep.subr.mxu0 0.0
        %861 = vmatpush2.msra.mxu0 0.0
        %862 = vmatprep.subr.mxu0 0.0
        %863 = vmatpush2.msra.mxu0 0.0
        %864 = vmatprep.subr.mxu0 0.0
        %865 = vmatpush2.msra.mxu0 0.0
        %866 = vmatprep.subr.mxu0 0.0
        %867 = vmatpush2.msra.mxu0 0.0
        %868 = vmatprep.subr.mxu0 0.0
        %869 = vmatpush2.msra.mxu0 0.0
        %870 = vmatprep.subr.mxu0 0.0
        %871 = vmatpush2.msra.mxu0 0.0
        %872 = vmatprep.subr.mxu0 0.0
        %873 = vmatpush2.msra.mxu0 0.0
        %874 = vmatprep.mubr.f32.mxu0 0.0
        %875 = vmatmul.mubr.f32.gmra.mxu0 %v805
        %v876 = vpop.f32.mrf.mxu0
        %v877 = vadd.f32 0.0, %v876
        %v878 = vpop.f32.mrf.mxu0
        %879 = vmatprep.mubr.f32.mxu0 0.0
        %880 = vmatmul.mubr.f32.gmra.mxu0 %v808
        %v881 = vpop.f32.mrf.mxu0
        %v882 = vadd.f32 0.0, %v881
        %v883 = vpop.f32.mrf.mxu0
        %884 = vdwg.mxu0
        %v885 = vadd.f32 %v793, %v877
        %v886 = vadd.f32 %v798, %v882
        %v887 = vld [vmem:[%s4] sm:$0xff]
        %v888 = vld [vmem:[%s4 + $0x8] sm:$0xff]
        %890 = vset.pattern.permute.xlu0 0
        %891 = vperm.xlu0 %890, %v887
        %v892 = vpop.permute.xlu0 %891
        %895 = vset.pattern.permute.xlu0 0
        %896 = vperm.xlu0 %895, %v888
        %v897 = vpop.permute.xlu0 %896
        %v899 = vadd.f32 %v885, %v892
        %v900 = vadd.f32 %v886, %v897
        %v901 = vmax.f32 %v899, 0.0
        %v902 = vmax.f32 %v900, 0.0
        %v903 = vld [vmem:[%s5] sm:$0xff]
        %v904 = vld [vmem:[%s5 + $0x8] sm:$0xff]
        %v905 = vld [vmem:[%s6] sm:$0xff]
        %v906 = vld [vmem:[%s6 + $0x8] sm:$0xff]
        %908 = vset.pattern.permute.xlu0 0
        %909 = vperm.xlu0 %908, %v905
        %v910 = vpop.permute.xlu0 %909
        %913 = vset.pattern.permute.xlu0 0
        %914 = vperm.xlu0 %913, %v906
        %v915 = vpop.permute.xlu0 %914
        %v918 = vsel %vm328, %v903, 0
        %v921 = vsel %vm328, %v904, 0
        %923 = vmatprep.subr.mxu0 0.0
        %924 = vmatpush1.msra.mxu0 0.0
        %925 = vmatprep.subr.mxu0 0.0
        %926 = vmatpush1.msra.mxu0 0.0
        %927 = vmatprep.subr.mxu0 0.0
        %928 = vmatpush1.msra.mxu0 0.0
        %929 = vmatprep.subr.mxu0 0.0
        %930 = vmatpush1.msra.mxu0 0.0
        %931 = vmatprep.subr.mxu0 0.0
        %932 = vmatpush1.msra.mxu0 0.0
        %933 = vmatprep.subr.mxu0 0.0
        %934 = vmatpush1.msra.mxu0 0.0
        %935 = vmatprep.subr.mxu0 0.0
        %936 = vmatpush1.msra.mxu0 0.0
        %937 = vmatprep.subr.mxu0 0.0
        %938 = vmatpush1.msra.mxu0 0.0
        %939 = vmatprep.subr.mxu0 0.0
        %940 = vmatpush1.msra.mxu0 0.0
        %941 = vmatprep.subr.mxu0 0.0
        %942 = vmatpush1.msra.mxu0 0.0
        %943 = vmatprep.subr.mxu0 0.0
        %944 = vmatpush1.msra.mxu0 0.0
        %945 = vmatprep.subr.mxu0 0.0
        %946 = vmatpush1.msra.mxu0 0.0
        %947 = vmatprep.subr.mxu0 0.0
        %948 = vmatpush1.msra.mxu0 0.0
        %949 = vmatprep.subr.mxu0 0.0
        %950 = vmatpush1.msra.mxu0 0.0
        %951 = vmatprep.subr.mxu0 0.0
        %952 = vmatpush1.msra.mxu0 0.0
        %953 = vmatprep.subr.mxu0 0.0
        %954 = vmatpush1.msra.mxu0 %v310
        %955 = vmatprep.subr.mxu0 0.0
        %956 = vmatpush2.msra.mxu0 0.0
        %957 = vmatprep.subr.mxu0 0.0
        %958 = vmatpush2.msra.mxu0 0.0
        %959 = vmatprep.subr.mxu0 0.0
        %960 = vmatpush2.msra.mxu0 0.0
        %961 = vmatprep.subr.mxu0 0.0
        %962 = vmatpush2.msra.mxu0 0.0
        %963 = vmatprep.subr.mxu0 0.0
        %964 = vmatpush2.msra.mxu0 0.0
        %965 = vmatprep.subr.mxu0 0.0
        %966 = vmatpush2.msra.mxu0 0.0
        %967 = vmatprep.subr.mxu0 0.0
        %968 = vmatpush2.msra.mxu0 0.0
        %969 = vmatprep.subr.mxu0 0.0
        %970 = vmatpush2.msra.mxu0 0.0
        %971 = vmatprep.subr.mxu0 0.0
        %972 = vmatpush2.msra.mxu0 0.0
        %973 = vmatprep.subr.mxu0 0.0
        %974 = vmatpush2.msra.mxu0 0.0
        %975 = vmatprep.subr.mxu0 0.0
        %976 = vmatpush2.msra.mxu0 0.0
        %977 = vmatprep.subr.mxu0 0.0
        %978 = vmatpush2.msra.mxu0 0.0
        %979 = vmatprep.subr.mxu0 0.0
        %980 = vmatpush2.msra.mxu0 0.0
        %981 = vmatprep.subr.mxu0 0.0
        %982 = vmatpush2.msra.mxu0 0.0
        %983 = vmatprep.subr.mxu0 0.0
        %984 = vmatpush2.msra.mxu0 0.0
        %985 = vmatprep.subr.mxu0 0.0
        %986 = vmatpush2.msra.mxu0 0.0
        %987 = vmatprep.mubr.f32.mxu0 0.0
        %988 = vmatmul.mubr.f32.gmra.mxu0 %v918
        %v989 = vpop.f32.mrf.mxu0
        %v990 = vadd.f32 %v910, %v989
        %v991 = vpop.f32.mrf.mxu0
        %992 = vmatprep.mubr.f32.mxu0 0.0
        %993 = vmatmul.mubr.f32.gmra.mxu0 %v921
        %v994 = vpop.f32.mrf.mxu0
        %v995 = vadd.f32 %v915, %v994
        %v996 = vpop.f32.mrf.mxu0
        %997 = vdwg.mxu0
        %v998 = vadd.f32 %v990, %v901
        %v999 = vadd.f32 %v995, %v902
        %v1000 = vmax.f32 %v998, 0.0
        %v1001 = vmax.f32 %v999, 0.0
        %1002 = vst [vmem:[%s293] sm:$0xff] %v1000
        %1003 = vst [vmem:[%s293 + $0x8] sm:$0xff] %v1001
        %s1004 = sadd.s32 %s26, 1
        %p1005 = scmp.lt.s32.totalorder %s1004, 2
        // Predicated region
        $region53: #{tpu_custom_call.1} parent=47 // pred_check
          %p1006 = pneg %p1005
        $region54: #{tpu_custom_call.1} parent=47 // pred_check_branch
          %1008 = sbr.rel (%p1006) target = $region56
        $region55: #{tpu_custom_call.1} parent=47 // pred_region
          %v1009 = vld [vmem:[#allocation2 + $0x8] sm:$0xff]
          %vm1010 = vcmask 1048512
          %1011 = vst.msk [vmem:[#allocation2] sm:$0xff] %vm1010, %v1009
          %v1012 = vld [vmem:[#allocation3 + $0x8] sm:$0xff]
          %v1013 = vld [vmem:[#allocation3 + $0x18] sm:$0xff]
          %1014 = vst.msk [vmem:[#allocation3] sm:$0xff] %vm1010, %v1012
          %1015 = vst.msk [vmem:[#allocation3 + $0x10] sm:$0xff] %vm1010, %v1013
        $region56: #{tpu_custom_call.1} parent=47 // pred_fallthru
          _
        %s1016 = sand.u32 %s197, 1
        %s1017 = scalar_lea.sflag [#allocation5], %s1016
        %s1018 = sand.u32 %s197, 1
        %s1019 = smul.addr %s1018, 16
        %s1020 = scalar_lea.vmem [#allocation4], %s1019
        // Predicated region
        $region57: #{tpu_custom_call.1} parent=47 // pred_check
          %p1021 = pneg %p207
        $region58: #{tpu_custom_call.1} parent=47 // pred_check_branch
          %1023 = sbr.rel (%p1021) target = $region60
        $region59: #{tpu_custom_call.1} parent=47 // pred_region
          %s1025 = ssub.s32 256, 256
          %1026 = vsyncadd %s1017, %s1025
          %s1027 = smul.addr %s25, 4
          %s1028 = sadd.s32 %s26, %s1027
          %s1029 = smul.addr %s1028, 128
          %s1030 = scalar_lea.hbm %s7, %s1029
          %s1031 = sshll.u32 %s1020, 4
          %s1032 = int_to_ptr.vmem [resolvable:$true] %s1031
          %1037 = dma.vmem_to_hbm [thread:$0]  %s1032, 256, %s1030, %s1017, 128, 256, 8
        $region60: #{tpu_custom_call.1} parent=47 // pred_fallthru
          _
      $region48: #{tpu_custom_call.1} parent=5 // pred_fallthru
        _
      %p1038 = scmp.le.s32.totalorder 2, %s16
      // Predicated region
      $region61: #{tpu_custom_call.1} parent=5 // pred_check
        %p1039 = pneg %p1038
      $region62: #{tpu_custom_call.1} parent=5 // pred_check_branch
        %1041 = sbr.rel (%p1039) target = $region64
      $region63: #{tpu_custom_call.1} parent=5 // pred_region
        %s1042 = ssub.s32 %s16, 2
        // Predicated region
        $region65: #{tpu_custom_call.1} parent=63 // pred_check
          %p1043 = pneg %p213
        $region66: #{tpu_custom_call.1} parent=63 // pred_check_branch
          %1045 = sbr.rel (%p1043) target = $region68
        $region67: #{tpu_custom_call.1} parent=63 // pred_region
          %s1046 = sand.u32 %s198, 1
          %s1047 = scalar_lea.sflag [#allocation5], %s1046
          %s1048 = sand.u32 %s198, 1
          %s1049 = smul.addr %s1048, 16
          %s1050 = scalar_lea.vmem [#allocation4], %s1049
          %1051 = dma.done %s1047, 256
        $region68: #{tpu_custom_call.1} parent=63 // pred_fallthru
          _
      $region64: #{tpu_custom_call.1} parent=5 // pred_fallthru
        _
    $region6: #{tpu_custom_call.1} parent=1 // loop_footer
      %s20 = sadd.s32 1, %s16
    $region7: #{tpu_custom_call.1} parent=1 // loop_footer_branch
      %15 = sbr.rel target = $region3
    $region8: #{tpu_custom_call.1} parent=1 // loop_exit
      _
    %1052 = vsyncpa [#allocation5], 1
    %s1053 = scalar_lea.sflag [#allocation5], 1
    %1054 = vsyncpa %s1053, 1

</llo_original>
